<compile_context>
chip_gen: v5e
topology: v5e:2x2
jax: 0.10.0
libtpu: 0.0.40
codegen_flags: <defaults>
</compile_context>

<pallas_src>
import math
import functools
import numpy as np
import jax
import jax.numpy as jnp
from jax.experimental import pallas as pl
from jax.experimental.pallas import tpu as pltpu


def _round_up(x, m):
    return ((x + m - 1) // m) * m


# ---------------------------------------------------------------------------
# Pallas kernel: fused matmul with K-reduction accumulator + bias finalize.
#   grid = (M-tiles, K-tiles); axis 1 ("arbitrary") is the reduction axis.
#   p_ref   : (TM, TK)      fused [Re | Im] im2col patch tile (bf16/f32)
#   w_ref   : (TK, OUT_W)   block weight [[wr, wi], [-wi, wr]] tile
#   b_ref   : (1, OUT_W)    combined bias [br - bi | br + bi] (f32)
#   o_ref   : (TM, OUT_W)   packed [out_r | out_i] (f32)
#   acc_ref : (TM, OUT_W)   f32 VMEM accumulator (scratch)
# ---------------------------------------------------------------------------
def cconv_fused_kernel(p_ref, w_ref, b_ref, o_ref, acc_ref, *, precision):
    @pl.when(pl.program_id(1) == 0)
    def _init():
        acc_ref[...] = jnp.zeros_like(acc_ref)

    acc_ref[...] += jnp.dot(p_ref[...], w_ref[...],
                            preferred_element_type=jnp.float32,
                            precision=precision)

    @pl.when(pl.program_id(1) == pl.num_programs(1) - 1)
    def _finalize():
        o_ref[...] = acc_ref[...] + b_ref[...]


def _im2col(x, kh, kw, stride, padding):
    """x: (N, C', H, W) -> patches (N*OH*OW, C'*KH*KW), PyTorch OIHW weight order."""
    n, c, h, w = x.shape
    xp = jnp.pad(x, ((0, 0), (0, 0), (padding, padding), (padding, padding)))
    hp, wp = h + 2 * padding, w + 2 * padding
    oh = (hp - kh) // stride + 1
    ow = (wp - kw) // stride + 1
    cols = []
    for i in range(kh):
        for j in range(kw):
            cols.append(xp[:, :, i:i + stride * oh:stride, j:j + stride * ow:stride])
    # (N, C', KH*KW, OH, OW) -> (N, OH, OW, C', KH*KW) -> (M, C'*KH*KW)
    patches = jnp.stack(cols, axis=2)
    patches = patches.transpose(0, 3, 4, 1, 2).reshape(n * oh * ow, c * kh * kw)
    return patches, oh, ow


def _vmem_cap_bytes():
    """Generation-aware scoped-VMEM cap: ~3/4 of physical, v7x-safe fallback."""
    try:
        phys = int(pltpu.get_tpu_info().vmem_capacity_bytes)
    except Exception:
        phys = 64 << 20   # v7x-per-core fallback -> 48 MiB cap, safe on all chips
    return int(min(max((phys * 3) // 4, 24 << 20), 100 << 20))


@functools.partial(jax.jit, static_argnames=("stride", "padding", "tm",
                                             "compute_dtype", "precision"))
def cconv2d_forward(x_complex, w_real, w_imag, b_real, b_imag, stride, padding,
                    *, tm=1024, compute_dtype=jnp.bfloat16, precision=None):
    """Forward pass of CConv2d. x_complex: (N, C, H, W) complex64 -> complex64.

    For bit-tight f32 numerics pass compute_dtype=jnp.float32 and
    precision=jax.lax.Precision.HIGHEST (default precision may still use
    bf16 multi-pass on the MXU).
    """
    xr = jnp.real(x_complex).astype(jnp.float32)
    xi = jnp.imag(x_complex).astype(jnp.float32)
    n, c, h, w = xr.shape
    oc, _, kh, kw = w_real.shape
    k = c * kh * kw
    k2 = 2 * k

    # --- fused [Re | Im] patches in ONE im2col pass, directly in compute_dtype
    x_fused = jnp.concatenate([xr, xi], axis=1).astype(compute_dtype)  # (N, 2C, H, W)
    p, oh, ow = _im2col(x_fused, kh, kw, stride, padding)              # (M, 2K)
    m = n * oh * ow

    # --- geometry: packed lane-dense output slab, K tiling, VMEM-budgeted TM --
    out_w = _round_up(2 * oc, 128)        # packed [out_r | out_i], imag at [oc:2*oc)
    k2_pad = _round_up(k2, 128)
    if k2_pad <= 1024:
        tk = k2_pad                        # single K step: weight fetched once
    else:
        tk = next(t for t in (512, 256, 128) if k2_pad % t == 0)
    nk = k2_pad // tk

    itemsize = jnp.dtype(compute_dtype).itemsize
    vmem_cap = _vmem_cap_bytes()
    # Per-TM-row cost: 2x patch buffers + 2x f32 output buffers + f32 accumulator.
    per_row = 2 * tk * itemsize + 3 * out_w * 4
    fixed = 2 * tk * out_w * itemsize + 2 * 8 * out_w * 4
    budget = vmem_cap - fixed - (2 << 20)          # headroom for compiler scratch
    tm_budget = max(8, (budget // per_row) // 8 * 8)
    tm_grid = _round_up(max(1, -(-m // 4)), 8)     # keep >= ~4 parallel M steps
    tm = max(8, min(tm, tm_budget, tm_grid, _round_up(m, 8)))
    m_pad = _round_up(m, tm)
    grid_m = m_pad // tm

    p = jnp.pad(p, ((0, m_pad - m), (0, k2_pad - k2)))

    # --- block weight [[wr, wi], [-wi, wr]] + combined bias, packed columns ---
    wr2 = w_real.reshape(oc, k).T.astype(jnp.float32)   # (K, OC)
    wi2 = w_imag.reshape(oc, k).T.astype(jnp.float32)
    w_blk = jnp.zeros((k2_pad, out_w), jnp.float32)
    w_blk = w_blk.at[:k, :oc].set(wr2)
    w_blk = w_blk.at[:k, oc:2 * oc].set(wi2)
    w_blk = w_blk.at[k:k2, :oc].set(-wi2)
    w_blk = w_blk.at[k:k2, oc:2 * oc].set(wr2)
    w_blk = w_blk.astype(compute_dtype)

    br = b_real.astype(jnp.float32)
    bi = b_imag.astype(jnp.float32)
    bias = jnp.zeros((1, out_w), jnp.float32)
    bias = bias.at[0, :oc].set(br - bi)
    bias = bias.at[0, oc:2 * oc].set(br + bi)

    # --- BlockSpecs ------------------------------------------------------------
    p_spec = pl.BlockSpec((tm, tk), lambda i, kk: (i, kk))
    o_spec = pl.BlockSpec((tm, out_w), lambda i, kk: (i, 0))
    w_map = lambda i, kk: (kk, 0)
    b_map = lambda i, kk: (0, 0)
    # v7x: constant-index resident weight/bias are double-buffered by default;
    # single-buffer them once the weight is big enough to matter (saves a full
    # resident-weight copy out of the 64 MiB VMEM).  Not exercised at toy sizes.
    if nk == 1 and k2_pad * out_w * itemsize > (2 << 20):
        w_spec = pl.BlockSpec((tk, out_w), w_map, pipeline_mode=pl.Buffered(1))
        b_spec = pl.BlockSpec((1, out_w), b_map, pipeline_mode=pl.Buffered(1))
    else:
        w_spec = pl.BlockSpec((tk, out_w), w_map)
        b_spec = pl.BlockSpec((1, out_w), b_map)

    # --- explicit VMEM limit from the actual tile budget -----------------------
    needed = (2 * tm * tk * itemsize          # patch tile x2 buffers
              + 2 * tk * out_w * itemsize     # weight tile x2 buffers
              + 2 * tm * out_w * 4            # output tile x2 buffers
              + tm * out_w * 4                # f32 accumulator scratch
              + 2 * 8 * out_w * 4)            # bias (padded sublanes)
    vmem_limit = int(min(vmem_cap, max(needed + (4 << 20), 16 << 20)))

    out = pl.pallas_call(
        functools.partial(cconv_fused_kernel, precision=precision),
        out_shape=jax.ShapeDtypeStruct((m_pad, out_w), jnp.float32),
        grid_spec=pltpu.PrefetchScalarGridSpec(
            num_scalar_prefetch=0,
            grid=(grid_m, nk),
            in_specs=[p_spec, w_spec, b_spec],
            out_specs=o_spec,
            scratch_shapes=[pltpu.VMEM((tm, out_w), jnp.float32)],
        ),
        compiler_params=pltpu.CompilerParams(
            dimension_semantics=("parallel" if grid_m > 1 else "arbitrary",
                                 "arbitrary"),
            vmem_limit_bytes=vmem_limit),
    )(p, w_blk, bias)

    # --- unpack packed [out_r | out_i] slab, restore NCHW complex --------------
    # TODO(synk): emit NHWC (or two lane-dense planes) when the downstream
    # consumer allows it, avoiding these transpose + complex-pack HBM passes.
    c_real = out[:m, :oc].reshape(n, oh, ow, oc).transpose(0, 3, 1, 2)
    c_im = out[:m, oc:2 * oc].reshape(n, oh, ow, oc).transpose(0, 3, 1, 2)
    return jax.lax.complex(c_real, c_im)


# ---------------------------------------------------------------------------
# Deterministic parameter init (Xavier-uniform weights, Conv2d-default biases).
# ---------------------------------------------------------------------------
def init_cconv2d_params(key, in_channels, out_channels, kernel_size):
    kh = kw = kernel_size
    fan_in = in_channels * kh * kw
    fan_out = out_channels * kh * kw
    w_bound = math.sqrt(6.0 / (fan_in + fan_out))     # xavier_uniform_
    b_bound = 1.0 / math.sqrt(fan_in)                 # Conv2d default bias init
    k1, k2, k3, k4 = jax.random.split(key, 4)
    w_shape = (out_channels, in_channels, kh, kw)
    w_real = jax.random.uniform(k1, w_shape, jnp.float32, -w_bound, w_bound)
    w_imag = jax.random.uniform(k2, w_shape, jnp.float32, -w_bound, w_bound)
    b_real = jax.random.uniform(k3, (out_channels,), jnp.float32, -b_bound, b_bound)
    b_imag = jax.random.uniform(k4, (out_channels,), jnp.float32, -b_bound, b_bound)
    return w_real, w_imag, b_real, b_imag


# ---------------------------------------------------------------------------
# Pure-JAX reference (for correctness check).
# ---------------------------------------------------------------------------
def _conv_ref(x, w, b, stride, padding):
    out = jax.lax.conv_general_dilated(
        x, w, window_strides=(stride, stride),
        padding=[(padding, padding), (padding, padding)],
        dimension_numbers=('NCHW', 'OIHW', 'NCHW'))
    return out + b[None, :, None, None]


def cconv2d_reference(x_complex, w_real, w_imag, b_real, b_imag, stride, padding):
    xr = jnp.real(x_complex).astype(jnp.float32)
    xi = jnp.imag(x_complex).astype(jnp.float32)
    c_real = _conv_ref(xr, w_real, b_real, stride, padding) - \
             _conv_ref(xi, w_imag, b_imag, stride, padding)
    c_im = _conv_ref(xr, w_imag, b_imag, stride, padding) + \
           _conv_ref(xi, w_real, b_real, stride, padding)
    return jax.lax.complex(c_real, c_im)


if __name__ == "__main__":
    # Small config consistent with the module: N=2, Cin=4, H=W=16,
    # Cout=8, kernel=3, stride=1, padding=1.
    in_channels, out_channels = 4, 8
    kernel_size, stride, padding = 3, 1, 1

    key = jax.random.PRNGKey(0)
    k_x_r, k_x_i, k_p = jax.random.split(key, 3)
    x_real = jax.random.normal(k_x_r, (2, in_channels, 16, 16), jnp.float32)
    x_imag = jax.random.normal(k_x_i, (2, in_channels, 16, 16), jnp.float32)
    x = jax.lax.complex(x_real, x_imag)   # (2, 4, 16, 16) complex64

    w_real, w_imag, b_real, b_imag = init_cconv2d_params(
        k_p, in_channels, out_channels, kernel_size)

    ref = jax.block_until_ready(
        cconv2d_reference(x, w_real, w_imag, b_real, b_imag, stride, padding))

    # Fast path: bf16 MXU operands, f32 accumulation.
    out = cconv2d_forward(x, w_real, w_imag, b_real, b_imag, stride, padding)
    out = jax.block_until_ready(out)
    np.testing.assert_allclose(np.asarray(jnp.real(out)), np.asarray(jnp.real(ref)),
                               rtol=2e-2, atol=2e-2)
    np.testing.assert_allclose(np.asarray(jnp.imag(out)), np.asarray(jnp.imag(ref)),
                               rtol=2e-2, atol=2e-2)

    # f32-operand path through the same kernel (pass precision=HIGHEST for
    # bit-tight numerics; default MXU precision may use bf16 passes, so keep a
    # conservative tolerance here).
    out32 = cconv2d_forward(x, w_real, w_imag, b_real, b_imag, stride, padding,
                            compute_dtype=jnp.float32)
    out32 = jax.block_until_ready(out32)
    np.testing.assert_allclose(np.asarray(jnp.real(out32)), np.asarray(jnp.real(ref)),
                               rtol=2e-2, atol=2e-2)
    np.testing.assert_allclose(np.asarray(jnp.imag(out32)), np.asarray(jnp.imag(ref)),
                               rtol=2e-2, atol=2e-2)

    assert out.shape == (2, out_channels, 16, 16) and out.dtype == jnp.complex64

    print("KERNEL_OK")
</pallas_src>

<mosaic_0001>
module attributes {stable_mosaic.version = 11 : i64} {
  func.func @cconv_fused_kernel(%arg0: i32, %arg1: i32, %arg2: memref<128x128xbf16, #tpu.memory_space<vmem>>, %arg3: memref<128x128xbf16, #tpu.memory_space<vmem>>, %arg4: memref<1x128xf32, #tpu.memory_space<vmem>>, %arg5: memref<128x128xf32, #tpu.memory_space<vmem>>, %arg6: memref<128x128xf32, #tpu.memory_space<vmem>>) attributes {dimension_semantics = [#tpu.dimension_semantics<parallel>, #tpu.dimension_semantics<arbitrary>], iteration_bounds = array<i64: 4, 1>, scalar_prefetch = 0 : i64, scratch_operands = 1 : i64, tpu.core_type = #tpu.core_type<tc>, window_params = [{transform_indices = @transform_0, window_bounds = array<i64: 128, 128>}, {transform_indices = @transform_1, window_bounds = array<i64: 128, 128>}, {pipeline_mode = #tpu.pipeline_mode<synchronous>, transform_indices = @transform_2, window_bounds = array<i64: 1, 128>}, {transform_indices = @transform_3, window_bounds = array<i64: 128, 128>}]} {
    %c0_i32 = arith.constant 0 : i32
    %0 = arith.cmpi eq, %arg1, %c0_i32 : i32
    %1 = arith.extui %0 : i1 to i32
    %c0_i32_0 = arith.constant 0 : i32
    %2 = arith.cmpi ne, %1, %c0_i32_0 : i32
    scf.if %2 {
      %cst_10 = arith.constant 0.000000e+00 : f32
      %12 = vector.broadcast %cst_10 : f32 to vector<128x128xf32>
      %c0_11 = arith.constant 0 : index
      %c0_12 = arith.constant 0 : index
      %13 = vector.load %arg6[%c0_11, %c0_12] : memref<128x128xf32, #tpu.memory_space<vmem>>, vector<128x128xf32>
      tpu.vector_store %arg6[%c0_11, %c0_12], %12 {strides = array<i32>} : memref<128x128xf32, #tpu.memory_space<vmem>>, vector<128x128xf32>,
    } else {
    }
    %c0 = arith.constant 0 : index
    %c0_1 = arith.constant 0 : index
    %3 = vector.load %arg6[%c0, %c0_1] : memref<128x128xf32, #tpu.memory_space<vmem>>, vector<128x128xf32>
    %c0_2 = arith.constant 0 : index
    %c0_3 = arith.constant 0 : index
    %4 = vector.load %arg2[%c0_2, %c0_3] : memref<128x128xbf16, #tpu.memory_space<vmem>>, vector<128x128xbf16>
    %c0_4 = arith.constant 0 : index
    %c0_5 = arith.constant 0 : index
    %5 = vector.load %arg3[%c0_4, %c0_5] : memref<128x128xbf16, #tpu.memory_space<vmem>>, vector<128x128xbf16>
    %cst = arith.constant dense<0.000000e+00> : vector<128x128xf32>
    %6 = tpu.matmul %4, %5, %cst {dimension_numbers = #tpu.dot_dimension_numbers<[1], [0], [0], [1], [0, 0, 1, 1], [], []>} : vector<128x128xbf16>, vector<128x128xbf16>, vector<128x128xf32> -> vector<128x128xf32>
    %7 = arith.addf %3, %6 : vector<128x128xf32>
    %c0_6 = arith.constant 0 : index
    %c0_7 = arith.constant 0 : index
    %8 = vector.load %arg6[%c0_6, %c0_7] : memref<128x128xf32, #tpu.memory_space<vmem>>, vector<128x128xf32>
    tpu.vector_store %arg6[%c0_6, %c0_7], %7 {strides = array<i32>} : memref<128x128xf32, #tpu.memory_space<vmem>>, vector<128x128xf32>,
    %c0_i32_8 = arith.constant 0 : i32
    %9 = arith.cmpi eq, %arg1, %c0_i32_8 : i32
    %10 = arith.extui %9 : i1 to i32
    %c0_i32_9 = arith.constant 0 : i32
    %11 = arith.cmpi ne, %10, %c0_i32_9 : i32
    scf.if %11 {
      %c0_10 = arith.constant 0 : index
      %c0_11 = arith.constant 0 : index
      %12 = vector.load %arg6[%c0_10, %c0_11] : memref<128x128xf32, #tpu.memory_space<vmem>>, vector<128x128xf32>
      %c0_12 = arith.constant 0 : index
      %c0_13 = arith.constant 0 : index
      %13 = vector.load %arg4[%c0_12, %c0_13] : memref<1x128xf32, #tpu.memory_space<vmem>>, vector<1x128xf32>
      %14 = vector.broadcast %13 : vector<1x128xf32> to vector<128x128xf32>
      %15 = arith.addf %12, %14 : vector<128x128xf32>
      %c0_14 = arith.constant 0 : index
      %c0_15 = arith.constant 0 : index
      %16 = vector.load %arg5[%c0_14, %c0_15] : memref<128x128xf32, #tpu.memory_space<vmem>>, vector<128x128xf32>
      tpu.vector_store %arg5[%c0_14, %c0_15], %15 {strides = array<i32>} : memref<128x128xf32, #tpu.memory_space<vmem>>, vector<128x128xf32>,
    } else {
    }
    return
  }
  func.func @transform_0(%arg0: i32, %arg1: i32) -> (i32, i32) {
    %c0_i32 = arith.constant 0 : i32
    return %arg0, %arg1 : i32, i32
  }
  func.func @transform_1(%arg0: i32, %arg1: i32) -> (i32, i32) {
    %c0_i32 = arith.constant 0 : i32
    %c0_i32_0 = arith.constant 0 : i32
    return %arg1, %c0_i32 : i32, i32
  }
  func.func @transform_2(%arg0: i32, %arg1: i32) -> (i32, i32) {
    %c0_i32 = arith.constant 0 : i32
    %c0_i32_0 = arith.constant 0 : i32
    %c0_i32_1 = arith.constant 0 : i32
    return %c0_i32, %c0_i32_0 : i32, i32
  }
  func.func @transform_3(%arg0: i32, %arg1: i32) -> (i32, i32) {
    %c0_i32 = arith.constant 0 : i32
    %c0_i32_0 = arith.constant 0 : i32
    return %arg0, %c0_i32 : i32, i32
  }
}

</mosaic_0001>

<llo_original>
// kernel: custom-call.1
$region0: #{custom-call.1}
  %s0 = inlined_call_operand.hbm [shape: c64[2,4,16,16], index: 0, kind: input, shape index: {}]
  %s1 = inlined_call_operand.vmem [shape: f32[2,4,16,16], index: 1, kind: output, shape index: {}]
  %s2 = scalar_lea.hbm %s0, 128
  $region1: #{custom-call.1} parent=0
    #allocation0 [shape = 's32[1]{0}', space=sflag, size = 0x4, scoped, tag = 'scoped memory for custom-call.1']
    %3 = vsyncpa [#allocation0], 0
    %s5 = sshll.u32 %s2, 4
    %s6 = int_to_ptr.hbm [resolvable:$true] %s5
    %s7 = sshll.u32 %s1, 4
    %s8 = int_to_ptr.vmem [resolvable:$true] %s7
    %10 = dma.hbm_to_vmem [thread:$0]  %s6, 2048, %s8, [#allocation0]
    %12 = dma.done [#allocation0], 2048
    %13 = vsyncpa [#allocation0], 1

// kernel: custom-call
$region0: #{custom-call}
  %s0 = inlined_call_operand.hbm [shape: c64[2,4,16,16], index: 0, kind: input, shape index: {}]
  %s1 = inlined_call_operand.vmem [shape: f32[2,4,16,16], index: 1, kind: output, shape index: {}]
  $region1: #{custom-call} parent=0
    #allocation0 [shape = 's32[1]{0}', space=sflag, size = 0x4, scoped, tag = 'scoped memory for custom-call']
    %2 = vsyncpa [#allocation0], 0
    %s4 = sshll.u32 %s0, 4
    %s5 = int_to_ptr.hbm [resolvable:$true] %s4
    %s6 = sshll.u32 %s1, 4
    %s7 = int_to_ptr.vmem [resolvable:$true] %s6
    %9 = dma.hbm_to_vmem [thread:$0]  %s5, 2048, %s7, [#allocation0]
    %11 = dma.done [#allocation0], 2048
    %12 = vsyncpa [#allocation0], 1

// kernel: custom-call.2
$region0: #{custom-call.2}
  %s0 = inlined_call_operand.vmem [shape: f32[2,8,16,16], index: 0, kind: input, shape index: {}]
  %s1 = inlined_call_operand.vmem [shape: f32[2,8,16,16], index: 1, kind: input, shape index: {}]
  %s2 = inlined_call_operand.hbm [shape: c64[2,8,16,16], index: 2, kind: output, shape index: {}]
  %s3 = scalar_lea.hbm %s2, 256
  $region1: #{custom-call.2} parent=0
    #allocation0 [shape = 's32[1]{0}', space=sflag, size = 0x4, scoped, tag = 'scoped memory for custom-call.2']
    %4 = vsyncpa [#allocation0], 0
    %s6 = sshll.u32 %s0, 4
    %s7 = int_to_ptr.vmem [resolvable:$true] %s6
    %s8 = sshll.u32 %s2, 4
    %s9 = int_to_ptr.hbm [resolvable:$true] %s8
    %11 = dma.vmem_to_hbm [thread:$0]  %s7, 4096, %s9, [#allocation0]
    %13 = dma.done [#allocation0], 4096
    %14 = vsyncpa [#allocation0], 1
  $region2: #{custom-call.2} parent=0
    #allocation1 [shape = 's32[1]{0}', space=sflag, size = 0x4, scoped, tag = 'scoped memory for custom-call.2']
    %15 = vsyncpa [#allocation1], 0
    %s17 = sshll.u32 %s1, 4
    %s18 = int_to_ptr.vmem [resolvable:$true] %s17
    %s19 = sshll.u32 %s3, 4
    %s20 = int_to_ptr.hbm [resolvable:$true] %s19
    %22 = dma.vmem_to_hbm [thread:$0]  %s18, 4096, %s20, [#allocation1]
    %24 = dma.done [#allocation1], 4096
    %25 = vsyncpa [#allocation1], 1

// kernel: cconv2d_forward.1
$region0: #{cconv2d_forward.1}
  #allocation0 [shape = 'u32[]', space=smem, size = 0x4, offset = 0x4, fixed_abs, tag = 'smem constant byte address 0x4 - core index']
  #allocation1 [shape = 'u32[72,128]{1,0:T(1,128)}', space=vmem, size = 0x9000, scoped, tag = 'internal scratch']
  #allocation2 [shape = 'f32[128,128]{1,0:T(8,128)}', space=vmem, size = 0x10000, scoped, tag = 'scratch operand']
  %s0 = inlined_call_operand.vmem [shape: bf16[512,128], index: 0, kind: input, shape index: {}]
  %s1 = inlined_call_operand.vmem [shape: bf16[128,128], index: 1, kind: input, shape index: {}]
  %s2 = inlined_call_operand.vmem [shape: f32[1,128], index: 2, kind: input, shape index: {}]
  %s3 = inlined_call_operand.vmem [shape: f32[512,128], index: 3, kind: output, shape index: {}]
  %s4 = sld [smem:[#allocation0]]
  $region53: #{cconv2d_forward.1} parent=0
    _
  %s6 = ssub.s32 1, %s4
  %s7 = scalar_select 0, %s6, %s4
  loop: start=0, step=1, limit=6
  $region2: #{cconv2d_forward.1} parent=0 // loop_pre_header
    _
  $region3: #{cconv2d_forward.1} parent=0 // loop_header
    %s9 = sphi 0, %s13
    %p10 = scmp.ge.s32.totalorder %s9, 6
    %s16 = sphi 0, %s28
    %s17 = sphi 0, %s24
    %s18 = sphi 0, %s16
    %s19 = sphi 0, %s17
    %s20 = sphi 0, %s18
    %s21 = sphi 0, %s19
    %s33 = sphi 0, %s35
    %s36 = sphi 0, %s33
    %s37 = sphi 0, %s36
    %s53 = sphi 0, %s37
    %s59 = sphi 0, %s61
    %s62 = sphi 0, %s59
    %s63 = sphi 0, %s62
    %s79 = sphi 0, %s63
    %s83 = sphi 0, %s83
    %s85 = sphi 0, %s83
    %s86 = sphi 0, %s85
    %s100 = sphi 0, %s86
    %s106 = sphi 0, %s108
    %s109 = sphi 0, %s106
    %s110 = sphi 0, %s109
    %s126 = sphi 0, %s110
  $region4: #{cconv2d_forward.1} parent=0 // loop_header_branch
    %12 = sbr.rel (%p10) target = $region8
  $region5: #{cconv2d_forward.1} parent=0 // loop_body
    %s14 = ssub.s32 %s9, 1
    %s15 = ssub.s32 %s9, 2
    %s22 = sadd.s32 1, %s17
    %p23 = scmp.ge.s32.totalorder %s22, 1
    %s24 = scalar_select %p23, 0, %s22
    %s25 = sadd.s32 1, %s16
    %s26 = scalar_select %p23, %s25, %s16
    %p27 = scmp.ge.s32.totalorder %s26, 4
    %s28 = scalar_select %p27, 0, %s26
    %s29 = ssub.s32 %s16, %s28
    %s30 = ssub.s32 %s17, %s24
    %s31 = sor.u32 %s29, %s30
    %p32 = scmp.eq.s32.totalorder %s31, 0
    %s34 = sadd.s32 %s33, 1
    %s35 = scalar_select %p32, %s33, %s34
    %p38 = pneg %p32
    %p39 = scmp.eq.s32.totalorder %s9, 3
    %p40 = por %p38, %p39
    %p41 = scmp.ne.s32.totalorder %s33, %s36
    %p42 = scmp.eq.s32.totalorder %s9, 0
    %p43 = por %p41, %p42
    %p44 = scmp.ne.s32.totalorder %s33, %s36
    %p45 = scmp.eq.s32.totalorder %s14, 3
    %p46 = por %p44, %p45
    %p47 = scmp.ne.s32.totalorder %s36, %s37
    %p48 = scmp.eq.s32.totalorder %s14, 0
    %p49 = por %p47, %p48
    %p50 = scmp.ne.s32.totalorder %s36, %s37
    %p51 = scmp.eq.s32.totalorder %s15, 3
    %p52 = por %p50, %p51
    %p54 = scmp.ne.s32.totalorder %s37, %s53
    %p55 = scmp.eq.s32.totalorder %s15, 0
    %p56 = por %p54, %p55
    %s57 = ssub.s32 %s17, %s24
    %p58 = scmp.eq.s32.totalorder %s57, 0
    %s60 = sadd.s32 %s59, 1
    %s61 = scalar_select %p58, %s59, %s60
    %p64 = pneg %p58
    %p65 = scmp.eq.s32.totalorder %s9, 3
    %p66 = por %p64, %p65
    %p67 = scmp.ne.s32.totalorder %s59, %s62
    %p68 = scmp.eq.s32.totalorder %s9, 0
    %p69 = por %p67, %p68
    %p70 = scmp.ne.s32.totalorder %s59, %s62
    %p71 = scmp.eq.s32.totalorder %s14, 3
    %p72 = por %p70, %p71
    %p73 = scmp.ne.s32.totalorder %s62, %s63
    %p74 = scmp.eq.s32.totalorder %s14, 0
    %p75 = por %p73, %p74
    %p76 = scmp.ne.s32.totalorder %s62, %s63
    %p77 = scmp.eq.s32.totalorder %s15, 3
    %p78 = por %p76, %p77
    %p80 = scmp.ne.s32.totalorder %s63, %s79
    %p81 = scmp.eq.s32.totalorder %s15, 0
    %p82 = por %p80, %p81
    %s84 = sadd.s32 %s83, 1
    %p87 = scmp.eq.s32.totalorder %s9, 3
    %p88 = scmp.ne.s32.totalorder %s83, %s85
    %p89 = scmp.eq.s32.totalorder %s9, 0
    %p90 = por %p88, %p89
    %p91 = scmp.ne.s32.totalorder %s83, %s85
    %p92 = scmp.eq.s32.totalorder %s14, 3
    %p93 = por %p91, %p92
    %p94 = scmp.ne.s32.totalorder %s85, %s86
    %p95 = scmp.eq.s32.totalorder %s14, 0
    %p96 = por %p94, %p95
    %p97 = scmp.ne.s32.totalorder %s85, %s86
    %p98 = scmp.eq.s32.totalorder %s15, 3
    %p99 = por %p97, %p98
    %p101 = scmp.ne.s32.totalorder %s86, %s100
    %p102 = scmp.eq.s32.totalorder %s15, 0
    %p103 = por %p101, %p102
    %s104 = ssub.s32 %s16, %s28
    %p105 = scmp.eq.s32.totalorder %s104, 0
    %s107 = sadd.s32 %s106, 1
    %s108 = scalar_select %p105, %s106, %s107
    %p111 = pneg %p105
    %p112 = scmp.eq.s32.totalorder %s9, 3
    %p113 = por %p111, %p112
    %p114 = scmp.ne.s32.totalorder %s106, %s109
    %p115 = scmp.eq.s32.totalorder %s9, 0
    %p116 = por %p114, %p115
    %p117 = scmp.ne.s32.totalorder %s106, %s109
    %p118 = scmp.eq.s32.totalorder %s14, 3
    %p119 = por %p117, %p118
    %p120 = scmp.ne.s32.totalorder %s109, %s110
    %p121 = scmp.eq.s32.totalorder %s14, 0
    %p122 = por %p120, %p121
    %p123 = scmp.ne.s32.totalorder %s109, %s110
    %p124 = scmp.eq.s32.totalorder %s15, 3
    %p125 = por %p123, %p124
    %p127 = scmp.ne.s32.totalorder %s110, %s126
    %p128 = scmp.eq.s32.totalorder %s15, 0
    %p129 = por %p127, %p128
    %p130 = scmp.le.s32.totalorder 1, %s9
    %p131 = scmp.lt.s32.totalorder %s9, 5
    %p132 = pnand %p130, %p131
    %p133 = pneg %p132
    // Predicated region
    $region9: #{cconv2d_forward.1} parent=5 // pred_check
      _
    $region10: #{cconv2d_forward.1} parent=5 // pred_check_branch
      %135 = sbr.rel (%p132) target = $region12
    $region11: #{cconv2d_forward.1} parent=5 // pred_region
      %s136 = ssub.s32 %s9, 1
      // Predicated region
      $region13: #{cconv2d_forward.1} parent=11 // pred_check
        %p137 = pneg %p75
      $region14: #{cconv2d_forward.1} parent=11 // pred_check_branch
        %139 = sbr.rel (%p137) target = $region16
      $region15: #{cconv2d_forward.1} parent=11 // pred_region
        %s140 = smul.u32 16, %s19
        %p141 = scmp.lt.s32.totalorder %s140, 15
        %s142 = scalar_select %p141, %s140, 15
        %s143 = smul.addr %s142, 4
        %s144 = scalar_lea.vmem %s1, %s143
        %s145 = smul.u32 16, %s19
      $region16: #{cconv2d_forward.1} parent=11 // pred_fallthru
        _
      // Predicated region
      $region17: #{cconv2d_forward.1} parent=11 // pred_check
        %p146 = pneg %p96
      $region18: #{cconv2d_forward.1} parent=11 // pred_check_branch
        %148 = sbr.rel (%p146) target = $region20
      $region19: #{cconv2d_forward.1} parent=11 // pred_region
        _
      $region20: #{cconv2d_forward.1} parent=11 // pred_fallthru
        _
    $region12: #{cconv2d_forward.1} parent=5 // pred_fallthru
      _
    %p149 = scmp.lt.s32.totalorder %s9, 4
    // Predicated region
    $region21: #{cconv2d_forward.1} parent=5 // pred_check
      %p150 = pneg %p149
    $region22: #{cconv2d_forward.1} parent=5 // pred_check_branch
      %152 = sbr.rel (%p150) target = $region24
    $region23: #{cconv2d_forward.1} parent=5 // pred_region
      // Predicated region
      $region25: #{cconv2d_forward.1} parent=23 // pred_check
        %p153 = pneg %p43
      $region26: #{cconv2d_forward.1} parent=23 // pred_check_branch
        %155 = sbr.rel (%p153) target = $region28
      $region27: #{cconv2d_forward.1} parent=23 // pred_region
        %s156 = smul.u32 16, %s16
        %p157 = scmp.lt.s32.totalorder %s156, 63
        %s158 = scalar_select %p157, %s156, 63
        %p159 = scmp.lt.s32.totalorder %s17, 0
        %s160 = scalar_select %p159, %s17, 0
        %s161 = sadd.s32 %s160, %s158
        %s162 = smul.addr %s161, 4
        %s163 = scalar_lea.vmem %s0, %s162
        %s164 = smul.u32 16, %s16
      $region28: #{cconv2d_forward.1} parent=23 // pred_fallthru
        _
    $region24: #{cconv2d_forward.1} parent=5 // pred_fallthru
      _
    %p165 = scmp.le.s32.totalorder 1, %s9
    %p166 = scmp.lt.s32.totalorder %s9, 5
    %p167 = pnand %p165, %p166
    %p168 = pneg %p167
    // Predicated region
    $region29: #{cconv2d_forward.1} parent=5 // pred_check
      _
    $region30: #{cconv2d_forward.1} parent=5 // pred_check_branch
      %170 = sbr.rel (%p167) target = $region32
    $region31: #{cconv2d_forward.1} parent=5 // pred_region
      %s171 = ssub.s32 %s9, 1
      %s172 = smul.u32 16, %s18
      %p173 = scmp.lt.s32.totalorder %s172, 63
      %s174 = scalar_select %p173, %s172, 63
      %p175 = scmp.lt.s32.totalorder %s19, 0
      %s176 = scalar_select %p175, %s19, 0
      %s177 = sadd.s32 %s176, %s174
      %s178 = smul.addr %s177, 4
      %s179 = scalar_lea.vmem %s0, %s178
      %p180 = pneg %p49
      %p181 = pneg %p46
      %s182 = smul.u32 16, %s19
      %p183 = scmp.lt.s32.totalorder %s182, 15
      %s184 = scalar_select %p183, %s182, 15
      %s185 = smul.addr %s184, 4
      %s186 = scalar_lea.vmem %s1, %s185
      %p187 = pneg %p75
      %p188 = pneg %p72
      %p189 = pneg %p96
      %p190 = pneg %p93
      %p191 = pneg %p122
      %p192 = pneg %p119
      %s193 = smul.u32 16, %s18
      %p194 = scmp.lt.s32.totalorder %s193, 63
      %s195 = scalar_select %p194, %s193, 63
      %s196 = smul.addr %s195, 8
      %s197 = scalar_lea.vmem %s3, %s196
      %s198 = smul.u32 16, %s18
      %p199 = scmp.lt.s32.totalorder %s198, 63
      %s200 = scalar_select %p199, %s198, 63
      %p201 = scmp.lt.s32.totalorder %s19, 0
      %s202 = scalar_select %p201, %s19, 0
      %s203 = sadd.s32 %s202, %s200
      %s204 = smul.addr %s203, 4
      %s205 = scalar_lea.vmem %s0, %s204
      %s206 = smul.u32 16, %s18
      %s207 = smul.u32 16, %s19
      %p208 = scmp.lt.s32.totalorder %s207, 15
      %s209 = scalar_select %p208, %s207, 15
      %s210 = smul.addr %s209, 4
      %s211 = scalar_lea.vmem %s1, %s210
      %s212 = smul.u32 16, %s19
      %s213 = smul.u32 16, %s18
      %p214 = scmp.lt.s32.totalorder %s213, 63
      %s215 = scalar_select %p214, %s213, 63
      %s216 = smul.addr %s215, 8
      %s217 = scalar_lea.vmem %s3, %s216
      %s218 = smul.u32 16, %s18
      %p219 = scmp.eq.s32.totalorder %s19, 0
      // Predicated region
      $region33: #{cconv2d_forward.1} parent=31 // pred_check
        %p220 = pneg %p219
      $region34: #{cconv2d_forward.1} parent=31 // pred_check_branch
        %222 = sbr.rel (%p220) target = $region36
      $region35: #{cconv2d_forward.1} parent=31 // pred_region
        %223 = vst [vmem:[#allocation2] sm:$0xff] 0.0
        %224 = vst [vmem:[#allocation2 + $0x8] sm:$0xff] 0.0
        %225 = vst [vmem:[#allocation2 + $0x10] sm:$0xff] 0.0
        %226 = vst [vmem:[#allocation2 + $0x18] sm:$0xff] 0.0
        %227 = vst [vmem:[#allocation2 + $0x20] sm:$0xff] 0.0
        %228 = vst [vmem:[#allocation2 + $0x28] sm:$0xff] 0.0
        %229 = vst [vmem:[#allocation2 + $0x30] sm:$0xff] 0.0
        %230 = vst [vmem:[#allocation2 + $0x38] sm:$0xff] 0.0
        %231 = vst [vmem:[#allocation2 + $0x40] sm:$0xff] 0.0
        %232 = vst [vmem:[#allocation2 + $0x48] sm:$0xff] 0.0
        %233 = vst [vmem:[#allocation2 + $0x50] sm:$0xff] 0.0
        %234 = vst [vmem:[#allocation2 + $0x58] sm:$0xff] 0.0
        %235 = vst [vmem:[#allocation2 + $0x60] sm:$0xff] 0.0
        %236 = vst [vmem:[#allocation2 + $0x68] sm:$0xff] 0.0
        %237 = vst [vmem:[#allocation2 + $0x70] sm:$0xff] 0.0
        %238 = vst [vmem:[#allocation2 + $0x78] sm:$0xff] 0.0
      $region36: #{cconv2d_forward.1} parent=31 // pred_fallthru
        _
      %v239 = vld [vmem:[#allocation2] sm:$0xff]
      %v240 = vld [vmem:[#allocation2 + $0x8] sm:$0xff]
      %v241 = vld [vmem:[#allocation2 + $0x10] sm:$0xff]
      %v242 = vld [vmem:[#allocation2 + $0x18] sm:$0xff]
      %v243 = vld [vmem:[#allocation2 + $0x20] sm:$0xff]
      %v244 = vld [vmem:[#allocation2 + $0x28] sm:$0xff]
      %v245 = vld [vmem:[#allocation2 + $0x30] sm:$0xff]
      %v246 = vld [vmem:[#allocation2 + $0x38] sm:$0xff]
      %v247 = vld [vmem:[#allocation2 + $0x40] sm:$0xff]
      %v248 = vld [vmem:[#allocation2 + $0x48] sm:$0xff]
      %v249 = vld [vmem:[#allocation2 + $0x50] sm:$0xff]
      %v250 = vld [vmem:[#allocation2 + $0x58] sm:$0xff]
      %v251 = vld [vmem:[#allocation2 + $0x60] sm:$0xff]
      %v252 = vld [vmem:[#allocation2 + $0x68] sm:$0xff]
      %v253 = vld [vmem:[#allocation2 + $0x70] sm:$0xff]
      %v254 = vld [vmem:[#allocation2 + $0x78] sm:$0xff]
      %v255 = vld [vmem:[%s205] sm:$0xf]
      %v256 = vld [vmem:[%s205 + $0x4] sm:$0xf]
      %v257 = vld [vmem:[%s205 + $0x8] sm:$0xf]
      %v258 = vld [vmem:[%s205 + $0xc] sm:$0xf]
      %v259 = vld [vmem:[%s205 + $0x10] sm:$0xf]
      %v260 = vld [vmem:[%s205 + $0x14] sm:$0xf]
      %v261 = vld [vmem:[%s205 + $0x18] sm:$0xf]
      %v262 = vld [vmem:[%s205 + $0x1c] sm:$0xf]
      %v263 = vld [vmem:[%s205 + $0x20] sm:$0xf]
      %v264 = vld [vmem:[%s205 + $0x24] sm:$0xf]
      %v265 = vld [vmem:[%s205 + $0x28] sm:$0xf]
      %v266 = vld [vmem:[%s205 + $0x2c] sm:$0xf]
      %v267 = vld [vmem:[%s205 + $0x30] sm:$0xf]
      %v268 = vld [vmem:[%s205 + $0x34] sm:$0xf]
      %v269 = vld [vmem:[%s205 + $0x38] sm:$0xf]
      %v270 = vld [vmem:[%s205 + $0x3c] sm:$0xf]
      %v271 = vld [vmem:[%s211] sm:$0xf]
      %v272 = vld [vmem:[%s211 + $0x4] sm:$0xf]
      %v273 = vld [vmem:[%s211 + $0x8] sm:$0xf]
      %v274 = vld [vmem:[%s211 + $0xc] sm:$0xf]
      %v275 = vld [vmem:[%s211 + $0x10] sm:$0xf]
      %v276 = vld [vmem:[%s211 + $0x14] sm:$0xf]
      %v277 = vld [vmem:[%s211 + $0x18] sm:$0xf]
      %v278 = vld [vmem:[%s211 + $0x1c] sm:$0xf]
      %v279 = vld [vmem:[%s211 + $0x20] sm:$0xf]
      %v280 = vld [vmem:[%s211 + $0x24] sm:$0xf]
      %v281 = vld [vmem:[%s211 + $0x28] sm:$0xf]
      %v282 = vld [vmem:[%s211 + $0x2c] sm:$0xf]
      %v283 = vld [vmem:[%s211 + $0x30] sm:$0xf]
      %v284 = vld [vmem:[%s211 + $0x34] sm:$0xf]
      %v285 = vld [vmem:[%s211 + $0x38] sm:$0xf]
      %v286 = vld [vmem:[%s211 + $0x3c] sm:$0xf]
      %v303 = vunpack.c.l.b16 %v255
      %v304 = vunpack.c.l.b16 %v256
      %v305 = vunpack.c.l.b16 %v257
      %v306 = vunpack.c.l.b16 %v258
      %v307 = vunpack.c.l.b16 %v259
      %v308 = vunpack.c.l.b16 %v260
      %v309 = vunpack.c.l.b16 %v261
      %v310 = vunpack.c.l.b16 %v262
      %v311 = vunpack.c.l.b16 %v263
      %v312 = vunpack.c.l.b16 %v264
      %v313 = vunpack.c.l.b16 %v265
      %v314 = vunpack.c.l.b16 %v266
      %v315 = vunpack.c.l.b16 %v267
      %v316 = vunpack.c.l.b16 %v268
      %v317 = vunpack.c.l.b16 %v269
      %v318 = vunpack.c.l.b16 %v270
      %v319 = vpack.c.b16 %v304, %v303
      %v320 = vpack.c.b16 %v306, %v305
      %v321 = vpack.c.b16 %v308, %v307
      %v322 = vpack.c.b16 %v310, %v309
      %v323 = vpack.c.b16 %v312, %v311
      %v324 = vpack.c.b16 %v314, %v313
      %v325 = vpack.c.b16 %v316, %v315
      %v326 = vpack.c.b16 %v318, %v317
      %v351 = vunpack.c.l.b16 %v271
      %v352 = vunpack.c.l.b16 %v272
      %v353 = vunpack.c.l.b16 %v273
      %v354 = vunpack.c.l.b16 %v274
      %v355 = vunpack.c.l.b16 %v275
      %v356 = vunpack.c.l.b16 %v276
      %v357 = vunpack.c.l.b16 %v277
      %v358 = vunpack.c.l.b16 %v278
      %v359 = vunpack.c.l.b16 %v279
      %v360 = vunpack.c.l.b16 %v280
      %v361 = vunpack.c.l.b16 %v281
      %v362 = vunpack.c.l.b16 %v282
      %v363 = vunpack.c.l.b16 %v283
      %v364 = vunpack.c.l.b16 %v284
      %v365 = vunpack.c.l.b16 %v285
      %v366 = vunpack.c.l.b16 %v286
      %v367 = vpack.c.b16 %v352, %v351
      %v368 = vpack.c.b16 %v354, %v353
      %v369 = vpack.c.b16 %v356, %v355
      %v370 = vpack.c.b16 %v358, %v357
      %v371 = vpack.c.b16 %v360, %v359
      %v372 = vpack.c.b16 %v362, %v361
      %v373 = vpack.c.b16 %v364, %v363
      %v374 = vpack.c.b16 %v366, %v365
      %383 = vmatpush.bf16.msra.mxu0 %v374
      %384 = vmatpush.bf16.msra.mxu0 %v373
      %385 = vmatpush.bf16.msra.mxu0 %v372
      %386 = vmatpush.bf16.msra.mxu0 %v371
      %387 = vmatpush.bf16.msra.mxu0 %v370
      %388 = vmatpush.bf16.msra.mxu0 %v369
      %389 = vmatpush.bf16.msra.mxu0 %v368
      %390 = vmatpush.bf16.msra.mxu0 %v367
      %391 = vmatmul.bf16.gmra.mxu0 %v319
      %v392 = vpop.f32.mrf.mxu0
      %v393 = vadd.f32 0.0, %v392
      %v394 = vpop.f32.mrf.mxu0
      %v395 = vadd.f32 0.0, %v394
      %396 = vmatmul.bf16.gmra.mxu0 %v320
      %v397 = vpop.f32.mrf.mxu0
      %v398 = vadd.f32 0.0, %v397
      %v399 = vpop.f32.mrf.mxu0
      %v400 = vadd.f32 0.0, %v399
      %401 = vmatmul.bf16.gmra.mxu0 %v321
      %v402 = vpop.f32.mrf.mxu0
      %v403 = vadd.f32 0.0, %v402
      %v404 = vpop.f32.mrf.mxu0
      %v405 = vadd.f32 0.0, %v404
      %406 = vmatmul.bf16.gmra.mxu0 %v322
      %v407 = vpop.f32.mrf.mxu0
      %v408 = vadd.f32 0.0, %v407
      %v409 = vpop.f32.mrf.mxu0
      %v410 = vadd.f32 0.0, %v409
      %411 = vmatmul.bf16.gmra.mxu0 %v323
      %v412 = vpop.f32.mrf.mxu0
      %v413 = vadd.f32 0.0, %v412
      %v414 = vpop.f32.mrf.mxu0
      %v415 = vadd.f32 0.0, %v414
      %416 = vmatmul.bf16.gmra.mxu0 %v324
      %v417 = vpop.f32.mrf.mxu0
      %v418 = vadd.f32 0.0, %v417
      %v419 = vpop.f32.mrf.mxu0
      %v420 = vadd.f32 0.0, %v419
      %421 = vmatmul.bf16.gmra.mxu0 %v325
      %v422 = vpop.f32.mrf.mxu0
      %v423 = vadd.f32 0.0, %v422
      %v424 = vpop.f32.mrf.mxu0
      %v425 = vadd.f32 0.0, %v424
      %426 = vmatmul.bf16.gmra.mxu0 %v326
      %v427 = vpop.f32.mrf.mxu0
      %v428 = vadd.f32 0.0, %v427
      %v429 = vpop.f32.mrf.mxu0
      %v430 = vadd.f32 0.0, %v429
      %431 = vdwg.mxu0
      %v432 = vadd.f32 %v239, %v393
      %v433 = vadd.f32 %v240, %v395
      %v434 = vadd.f32 %v241, %v398
      %v435 = vadd.f32 %v242, %v400
      %v436 = vadd.f32 %v243, %v403
      %v437 = vadd.f32 %v244, %v405
      %v438 = vadd.f32 %v245, %v408
      %v439 = vadd.f32 %v246, %v410
      %v440 = vadd.f32 %v247, %v413
      %v441 = vadd.f32 %v248, %v415
      %v442 = vadd.f32 %v249, %v418
      %v443 = vadd.f32 %v250, %v420
      %v444 = vadd.f32 %v251, %v423
      %v445 = vadd.f32 %v252, %v425
      %v446 = vadd.f32 %v253, %v428
      %v447 = vadd.f32 %v254, %v430
      %448 = vst [vmem:[#allocation2] sm:$0xff] %v432
      %449 = vst [vmem:[#allocation2 + $0x8] sm:$0xff] %v433
      %450 = vst [vmem:[#allocation2 + $0x10] sm:$0xff] %v434
      %451 = vst [vmem:[#allocation2 + $0x18] sm:$0xff] %v435
      %452 = vst [vmem:[#allocation2 + $0x20] sm:$0xff] %v436
      %453 = vst [vmem:[#allocation2 + $0x28] sm:$0xff] %v437
      %454 = vst [vmem:[#allocation2 + $0x30] sm:$0xff] %v438
      %455 = vst [vmem:[#allocation2 + $0x38] sm:$0xff] %v439
      %456 = vst [vmem:[#allocation2 + $0x40] sm:$0xff] %v440
      %457 = vst [vmem:[#allocation2 + $0x48] sm:$0xff] %v441
      %458 = vst [vmem:[#allocation2 + $0x50] sm:$0xff] %v442
      %459 = vst [vmem:[#allocation2 + $0x58] sm:$0xff] %v443
      %460 = vst [vmem:[#allocation2 + $0x60] sm:$0xff] %v444
      %461 = vst [vmem:[#allocation2 + $0x68] sm:$0xff] %v445
      %462 = vst [vmem:[#allocation2 + $0x70] sm:$0xff] %v446
      %463 = vst [vmem:[#allocation2 + $0x78] sm:$0xff] %v447
      // Predicated region
      $region37: #{cconv2d_forward.1} parent=31 // pred_check
        %p464 = pneg %p219
      $region38: #{cconv2d_forward.1} parent=31 // pred_check_branch
        %466 = sbr.rel (%p464) target = $region40
      $region39: #{cconv2d_forward.1} parent=31 // pred_region
        %v467 = vld [vmem:[#allocation2] sm:$0xff]
        %v468 = vld [vmem:[#allocation2 + $0x8] sm:$0xff]
        %v469 = vld [vmem:[#allocation2 + $0x10] sm:$0xff]
        %v470 = vld [vmem:[#allocation2 + $0x18] sm:$0xff]
        %v471 = vld [vmem:[#allocation2 + $0x20] sm:$0xff]
        %v472 = vld [vmem:[#allocation2 + $0x28] sm:$0xff]
        %v473 = vld [vmem:[#allocation2 + $0x30] sm:$0xff]
        %v474 = vld [vmem:[#allocation2 + $0x38] sm:$0xff]
        %v475 = vld [vmem:[#allocation2 + $0x40] sm:$0xff]
        %v476 = vld [vmem:[#allocation2 + $0x48] sm:$0xff]
        %v477 = vld [vmem:[#allocation2 + $0x50] sm:$0xff]
        %v478 = vld [vmem:[#allocation2 + $0x58] sm:$0xff]
        %v479 = vld [vmem:[#allocation2 + $0x60] sm:$0xff]
        %v480 = vld [vmem:[#allocation2 + $0x68] sm:$0xff]
        %v481 = vld [vmem:[#allocation2 + $0x70] sm:$0xff]
        %v482 = vld [vmem:[#allocation2 + $0x78] sm:$0xff]
        %v483 = vld [vmem:[%s2] sm:$0x1]
        %v485 = vperm.slane %v483, 0
        %v487 = vadd.f32 %v467, %v485
        %v488 = vadd.f32 %v468, %v485
        %v489 = vadd.f32 %v469, %v485
        %v490 = vadd.f32 %v470, %v485
        %v491 = vadd.f32 %v471, %v485
        %v492 = vadd.f32 %v472, %v485
        %v493 = vadd.f32 %v473, %v485
        %v494 = vadd.f32 %v474, %v485
        %v495 = vadd.f32 %v475, %v485
        %v496 = vadd.f32 %v476, %v485
        %v497 = vadd.f32 %v477, %v485
        %v498 = vadd.f32 %v478, %v485
        %v499 = vadd.f32 %v479, %v485
        %v500 = vadd.f32 %v480, %v485
        %v501 = vadd.f32 %v481, %v485
        %v502 = vadd.f32 %v482, %v485
        %503 = vst [vmem:[%s217] sm:$0xff] %v487
        %504 = vst [vmem:[%s217 + $0x8] sm:$0xff] %v488
        %505 = vst [vmem:[%s217 + $0x10] sm:$0xff] %v489
        %506 = vst [vmem:[%s217 + $0x18] sm:$0xff] %v490
        %507 = vst [vmem:[%s217 + $0x20] sm:$0xff] %v491
        %508 = vst [vmem:[%s217 + $0x28] sm:$0xff] %v492
        %509 = vst [vmem:[%s217 + $0x30] sm:$0xff] %v493
        %510 = vst [vmem:[%s217 + $0x38] sm:$0xff] %v494
        %511 = vst [vmem:[%s217 + $0x40] sm:$0xff] %v495
        %512 = vst [vmem:[%s217 + $0x48] sm:$0xff] %v496
        %513 = vst [vmem:[%s217 + $0x50] sm:$0xff] %v497
        %514 = vst [vmem:[%s217 + $0x58] sm:$0xff] %v498
        %515 = vst [vmem:[%s217 + $0x60] sm:$0xff] %v499
        %516 = vst [vmem:[%s217 + $0x68] sm:$0xff] %v500
        %517 = vst [vmem:[%s217 + $0x70] sm:$0xff] %v501
        %518 = vst [vmem:[%s217 + $0x78] sm:$0xff] %v502
      $region40: #{cconv2d_forward.1} parent=31 // pred_fallthru
        _
      %s519 = smul.u32 16, %s18
      %p520 = scmp.lt.s32.totalorder %s519, 63
      %s521 = scalar_select %p520, %s519, 63
      %s522 = smul.addr %s521, 8
      %s523 = scalar_lea.vmem %s3, %s522
      // Predicated region
      $region41: #{cconv2d_forward.1} parent=31 // pred_check
        %p524 = pneg %p119
      $region42: #{cconv2d_forward.1} parent=31 // pred_check_branch
        %526 = sbr.rel (%p524) target = $region44
      $region43: #{cconv2d_forward.1} parent=31 // pred_region
        %s527 = smul.u32 16, %s18
      $region44: #{cconv2d_forward.1} parent=31 // pred_fallthru
        _
    $region32: #{cconv2d_forward.1} parent=5 // pred_fallthru
      _
    %p528 = scmp.le.s32.totalorder 2, %s9
    // Predicated region
    $region45: #{cconv2d_forward.1} parent=5 // pred_check
      %p529 = pneg %p528
    $region46: #{cconv2d_forward.1} parent=5 // pred_check_branch
      %531 = sbr.rel (%p529) target = $region48
    $region47: #{cconv2d_forward.1} parent=5 // pred_region
      %s532 = ssub.s32 %s9, 2
      // Predicated region
      $region49: #{cconv2d_forward.1} parent=47 // pred_check
        %p533 = pneg %p125
      $region50: #{cconv2d_forward.1} parent=47 // pred_check_branch
        %535 = sbr.rel (%p533) target = $region52
      $region51: #{cconv2d_forward.1} parent=47 // pred_region
        %s536 = smul.u32 16, %s20
        %p537 = scmp.lt.s32.totalorder %s536, 63
        %s538 = scalar_select %p537, %s536, 63
        %s539 = smul.addr %s538, 8
        %s540 = scalar_lea.vmem %s3, %s539
      $region52: #{cconv2d_forward.1} parent=47 // pred_fallthru
        _
    $region48: #{cconv2d_forward.1} parent=5 // pred_fallthru
      _
  $region6: #{cconv2d_forward.1} parent=0 // loop_footer
    %s13 = sadd.s32 1, %s9
  $region7: #{cconv2d_forward.1} parent=0 // loop_footer_branch
    %8 = sbr.rel target = $region3
  $region8: #{cconv2d_forward.1} parent=0 // loop_exit
    _

</llo_original>
